<compile_context>
chip_gen: v6e
topology: v6e:2x2x1
jax: 0.10.0
libtpu: 0.0.40
codegen_flags: <defaults>
</compile_context>

<pallas_src>
import jax
import jax.numpy as jnp
from jax.experimental import pallas as pl
from jax.experimental.pallas import tpu as pltpu


_TARGET_CHUNK_BYTES = 4 << 20      # ~4 MiB per DMA descriptor
_MAX_CHUNKS_PER_INPUT = 8          # keep several descriptors in flight
_SMALL_FALLBACK_BYTES = 2 << 20    # below this, XLA's fused concat wins


def _plan_copies(n, sizes, offsets, itemsize, flat):
    """Static DMA plan.

    Returns a list of (input_idx, row_start, row_len, col_start, col_len,
    dst_col_start).  Row fields are ignored when `flat` (n == 1, 1-D refs).
    Zero-sized inputs are skipped entirely.
    """
    copies = []
    align = max(1, 512 // itemsize)  # 512 B boundary, in elements
    for i, (sz, off) in enumerate(zip(sizes, offsets)):
        if sz == 0:
            continue  # never build a zero-extent DMA
        bytes_i = n * sz * itemsize
        want = int(min(_MAX_CHUNKS_PER_INPUT,
                       max(1, -(-bytes_i // _TARGET_CHUNK_BYTES))))
        if flat:
            # Contiguous 1-D destination: chunk along the flattened axis on
            # 512 B-aligned boundaries.
            chunk = -(-sz // want)
            chunk = max(align, -(-chunk // align) * align)
            c0 = 0
            while c0 < sz:
                cn = min(chunk, sz - c0)
                copies.append((i, 0, 1, c0, cn, off + c0))
                c0 += cn
        else:
            # 2-D strided copy: prefer splitting along N; add column splits
            # (512 B-aligned) only if more concurrency is still wanted.
            row_chunks = min(n, want)
            col_chunks = max(1, -(-want // row_chunks))
            col_chunk = -(-sz // col_chunks)
            col_chunk = max(align, -(-col_chunk // align) * align)
            rows_per = -(-n // row_chunks)
            r0 = 0
            while r0 < n:
                rn = min(rows_per, n - r0)
                c0 = 0
                while c0 < sz:
                    cn = min(col_chunk, sz - c0)
                    copies.append((i, r0, rn, c0, cn, off + c0))
                    c0 += cn
                r0 += rn
    return copies


def _make_concat_dma_kernel(num_inputs, copies, flat):
    """Kernel that DMA-copies each planned chunk into its output slice."""

    def kernel(*refs):
        # refs = (x0_hbm, ..., x{k-1}_hbm, out_hbm, dma_sems)
        in_refs = refs[:num_inputs]
        out_ref = refs[num_inputs]
        sem = refs[num_inputs + 1]

        # Start every HBM->HBM DMA first so all transfers overlap across DMA
        # engines and saturate HBM bandwidth, then wait for all of them.
        started = []
        for k, (i, r0, rn, c0, cn, d0) in enumerate(copies):
            if flat:
                src = in_refs[i].at[pl.ds(c0, cn)]
                dst = out_ref.at[pl.ds(d0, cn)]
            else:
                src = in_refs[i].at[pl.ds(r0, rn), pl.ds(c0, cn)]
                dst = out_ref.at[pl.ds(r0, rn), pl.ds(d0, cn)]
            cp = pltpu.make_async_copy(src, dst, sem.at[k])
            cp.start()
            started.append(cp)
        for cp in started:
            cp.wait()

    return kernel


def _concat_last_dim_pallas(xs):
    """Concatenate 2-D (N, S_i) arrays along the last dim via HBM->HBM DMA."""
    n = int(xs[0].shape[0])
    dtype = xs[0].dtype
    itemsize = jnp.dtype(dtype).itemsize
    sizes = [int(x.shape[1]) for x in xs]
    total = sum(sizes)

    offsets, off = [], 0
    for s in sizes:
        offsets.append(off)
        off += s

    # Drop zero-width inputs; they contribute nothing and must not become DMAs.
    keep = [i for i, s in enumerate(sizes) if s > 0]
    xs_k = [xs[i] for i in keep]
    sizes_k = [sizes[i] for i in keep]
    offsets_k = [offsets[i] for i in keep]

    flat = (n == 1)
    if flat:
        # Fully contiguous destination slices: use 1-D refs / 1-D DMAs.
        xs_k = [x.reshape(x.shape[1]) for x in xs_k]
        out_shape = jax.ShapeDtypeStruct((total,), dtype)
    else:
        out_shape = jax.ShapeDtypeStruct((n, total), dtype)

    copies = _plan_copies(n, sizes_k, offsets_k, itemsize, flat)
    kernel = _make_concat_dma_kernel(len(xs_k), copies, flat)

    total_bytes = n * total * itemsize
    out = pl.pallas_call(
        kernel,
        out_shape=out_shape,
        # Everything stays in HBM: no auto-DMA / no VMEM staging, so there is
        # no VMEM-capacity concern on any generation (v7x: 64 MiB).
        in_specs=[pl.BlockSpec(memory_space=pl.ANY) for _ in xs_k],
        out_specs=pl.BlockSpec(memory_space=pl.ANY),
        scratch_shapes=[pltpu.SemaphoreType.DMA((len(copies),))],
        cost_estimate=pl.CostEstimate(
            flops=0, transcendentals=0, bytes_accessed=2 * total_bytes),
    )(*xs_k)
    return out.reshape(n, total)


def concatenate_forward(X, force_pallas=False):
    """Equivalent of Concatenate().forward(X) for a list of NCHW arrays."""
    assert len(X) >= 1
    n, _, h, w = X[0].shape
    dtype = X[0].dtype
    for x in X:
        assert x.ndim == 4
        assert x.shape[0] == n and x.shape[2] == h and x.shape[3] == w
        assert x.dtype == dtype

    itemsize = jnp.dtype(dtype).itemsize
    sizes = [int(x.shape[1]) * h * w for x in X]          # flattened per-batch sizes
    total_bytes = n * sum(sizes) * itemsize

    # Size-based dispatch: tiny concats are faster as XLA's fused concat.
    use_pallas = total_bytes > 0 and (force_pallas
                                      or total_bytes >= _SMALL_FALLBACK_BYTES)
    if use_pallas and n > 1:
        # DMA-efficiency guard (in BYTES, not elements): every strided row
        # segment must be >= 512 B and every destination offset 512 B aligned
        # (the latter follows when each segment size is a multiple of 512 B).
        for s in sizes:
            if s > 0 and (s * itemsize < 512 or (s * itemsize) % 512 != 0):
                use_pallas = False
                break
    if not use_pallas:
        return jnp.concatenate(X, axis=1)

    # torch.cat(X, dim=1) on NCHW == concat of the contiguous (N, C_i*H*W)
    # views along their last dim, reshaped back (both reshapes are free).
    xs2d = [x.reshape(n, x.shape[1] * h * w) for x in X]
    out2d = _concat_last_dim_pallas(xs2d)
    c_total = out2d.shape[1] // (h * w)
    return out2d.reshape(n, c_total, h, w)


if __name__ == "__main__":
    key = jax.random.PRNGKey(0)
    k0, k1, k2, k3 = jax.random.split(key, 4)

    # Small NCHW inputs with differing channel counts (concat axis = 1).
    n, h, w = 2, 16, 16
    x0 = jax.random.normal(k0, (n, 4, h, w), dtype=jnp.float32)
    x1 = jax.random.normal(k1, (n, 6, h, w), dtype=jnp.float32)
    x2 = jax.random.normal(k2, (n, 2, h, w), dtype=jnp.float32)
    X = [x0, x1, x2]
    ref = jnp.concatenate(X, axis=1)

    # 1) Default dispatch: small total -> jnp.concatenate fast path.
    out_small = jax.block_until_ready(concatenate_forward(X))
    assert out_small.shape == ref.shape == (n, 12, h, w)
    assert jnp.array_equal(out_small, ref)

    # 2) Force the Pallas DMA kernel on the same inputs (n > 1 strided path).
    out_pallas = jax.block_until_ready(concatenate_forward(X, force_pallas=True))
    assert out_pallas.shape == ref.shape
    assert jnp.array_equal(out_pallas, ref)

    # 3) n == 1 exercises the fully-contiguous 1-D DMA path.
    y = [jax.random.normal(k3, (1, 5, h, w), dtype=jnp.float32), x0[:1], x2[:1]]
    ref1 = jnp.concatenate(y, axis=1)
    out1 = jax.block_until_ready(concatenate_forward(y, force_pallas=True))
    assert out1.shape == ref1.shape == (1, 11, h, w)
    assert jnp.array_equal(out1, ref1)

    print("KERNEL_OK")
</pallas_src>

<mosaic_0001>
module attributes {stable_mosaic.version = 11 : i64} {
  func.func @kernel(%arg0: memref<2x1024xf32, #tpu.memory_space<any>>, %arg1: memref<2x1536xf32, #tpu.memory_space<any>>, %arg2: memref<2x512xf32, #tpu.memory_space<any>>, %arg3: memref<2x3072xf32, #tpu.memory_space<any>>, %arg4: memref<3x!tpu.dma_semaphore, #tpu.memory_space<semaphore_mem>>) attributes {dimension_semantics = [], scalar_prefetch = 0 : i64, scratch_operands = 1 : i64, tpu.core_type = #tpu.core_type<tc>} {
    %c0_i32 = arith.constant 0 : i32
    %c0_i32_0 = arith.constant 0 : i32
    %c0_i32_1 = arith.constant 0 : i32
    %0 = tpu.memref_slice %arg0[%c0_i32_0, %c0_i32_1] : memref<2x1024xf32, #tpu.memory_space<any>> -> memref<2x1024xf32, #tpu.memory_space<any>>
    %c0_i32_2 = arith.constant 0 : i32
    %c0_i32_3 = arith.constant 0 : i32
    %1 = tpu.memref_slice %arg3[%c0_i32_2, %c0_i32_3] : memref<2x3072xf32, #tpu.memory_space<any>> -> memref<2x1024xf32, #tpu.memory_space<any>>
    %2 = tpu.memref_slice %arg4[%c0_i32] : memref<3x!tpu.dma_semaphore, #tpu.memory_space<semaphore_mem>> -> memref<1x!tpu.dma_semaphore, #tpu.memory_space<semaphore_mem>>
    %3 = tpu.memref_squeeze %2 : memref<1x!tpu.dma_semaphore, #tpu.memory_space<semaphore_mem>> -> memref<!tpu.dma_semaphore, #tpu.memory_space<semaphore_mem>>
    tpu.enqueue_dma source(%0 : memref<2x1024xf32, #tpu.memory_space<any>>) target(%1 : memref<2x1024xf32, #tpu.memory_space<any>>) target_semaphore(%3 : memref<!tpu.dma_semaphore, #tpu.memory_space<semaphore_mem>>)
    %c1_i32 = arith.constant 1 : i32
    %c0_i32_4 = arith.constant 0 : i32
    %c0_i32_5 = arith.constant 0 : i32
    %4 = tpu.memref_slice %arg1[%c0_i32_4, %c0_i32_5] : memref<2x1536xf32, #tpu.memory_space<any>> -> memref<2x1536xf32, #tpu.memory_space<any>>
    %c0_i32_6 = arith.constant 0 : i32
    %c1024_i32 = arith.constant 1024 : i32
    %5 = tpu.memref_slice %arg3[%c0_i32_6, %c1024_i32] : memref<2x3072xf32, #tpu.memory_space<any>> -> memref<2x1536xf32, #tpu.memory_space<any>>
    %6 = tpu.memref_slice %arg4[%c1_i32] : memref<3x!tpu.dma_semaphore, #tpu.memory_space<semaphore_mem>> -> memref<1x!tpu.dma_semaphore, #tpu.memory_space<semaphore_mem>>
    %7 = tpu.memref_squeeze %6 : memref<1x!tpu.dma_semaphore, #tpu.memory_space<semaphore_mem>> -> memref<!tpu.dma_semaphore, #tpu.memory_space<semaphore_mem>>
    tpu.enqueue_dma source(%4 : memref<2x1536xf32, #tpu.memory_space<any>>) target(%5 : memref<2x1536xf32, #tpu.memory_space<any>>) target_semaphore(%7 : memref<!tpu.dma_semaphore, #tpu.memory_space<semaphore_mem>>)
    %c2_i32 = arith.constant 2 : i32
    %c0_i32_7 = arith.constant 0 : i32
    %c0_i32_8 = arith.constant 0 : i32
    %8 = tpu.memref_slice %arg2[%c0_i32_7, %c0_i32_8] : memref<2x512xf32, #tpu.memory_space<any>> -> memref<2x512xf32, #tpu.memory_space<any>>
    %c0_i32_9 = arith.constant 0 : i32
    %c2560_i32 = arith.constant 2560 : i32
    %9 = tpu.memref_slice %arg3[%c0_i32_9, %c2560_i32] : memref<2x3072xf32, #tpu.memory_space<any>> -> memref<2x512xf32, #tpu.memory_space<any>>
    %10 = tpu.memref_slice %arg4[%c2_i32] : memref<3x!tpu.dma_semaphore, #tpu.memory_space<semaphore_mem>> -> memref<1x!tpu.dma_semaphore, #tpu.memory_space<semaphore_mem>>
    %11 = tpu.memref_squeeze %10 : memref<1x!tpu.dma_semaphore, #tpu.memory_space<semaphore_mem>> -> memref<!tpu.dma_semaphore, #tpu.memory_space<semaphore_mem>>
    tpu.enqueue_dma source(%8 : memref<2x512xf32, #tpu.memory_space<any>>) target(%9 : memref<2x512xf32, #tpu.memory_space<any>>) target_semaphore(%11 : memref<!tpu.dma_semaphore, #tpu.memory_space<semaphore_mem>>)
    %c0_i32_10 = arith.constant 0 : i32
    %c0_i32_11 = arith.constant 0 : i32
    %c0_i32_12 = arith.constant 0 : i32
    %12 = tpu.memref_slice %arg0[%c0_i32_11, %c0_i32_12] : memref<2x1024xf32, #tpu.memory_space<any>> -> memref<2x1024xf32, #tpu.memory_space<any>>
    %c0_i32_13 = arith.constant 0 : i32
    %c0_i32_14 = arith.constant 0 : i32
    %13 = tpu.memref_slice %arg3[%c0_i32_13, %c0_i32_14] : memref<2x3072xf32, #tpu.memory_space<any>> -> memref<2x1024xf32, #tpu.memory_space<any>>
    %14 = tpu.memref_slice %arg4[%c0_i32_10] : memref<3x!tpu.dma_semaphore, #tpu.memory_space<semaphore_mem>> -> memref<1x!tpu.dma_semaphore, #tpu.memory_space<semaphore_mem>>
    %15 = tpu.memref_squeeze %14 : memref<1x!tpu.dma_semaphore, #tpu.memory_space<semaphore_mem>> -> memref<!tpu.dma_semaphore, #tpu.memory_space<semaphore_mem>>
    tpu.wait_dma2 semaphore(%15 : memref<!tpu.dma_semaphore, #tpu.memory_space<semaphore_mem>>) src(%12 : memref<2x1024xf32, #tpu.memory_space<any>>) dst(%13 : memref<2x1024xf32, #tpu.memory_space<any>>)
    %c1_i32_15 = arith.constant 1 : i32
    %c0_i32_16 = arith.constant 0 : i32
    %c0_i32_17 = arith.constant 0 : i32
    %16 = tpu.memref_slice %arg1[%c0_i32_16, %c0_i32_17] : memref<2x1536xf32, #tpu.memory_space<any>> -> memref<2x1536xf32, #tpu.memory_space<any>>
    %c0_i32_18 = arith.constant 0 : i32
    %c1024_i32_19 = arith.constant 1024 : i32
    %17 = tpu.memref_slice %arg3[%c0_i32_18, %c1024_i32_19] : memref<2x3072xf32, #tpu.memory_space<any>> -> memref<2x1536xf32, #tpu.memory_space<any>>
    %18 = tpu.memref_slice %arg4[%c1_i32_15] : memref<3x!tpu.dma_semaphore, #tpu.memory_space<semaphore_mem>> -> memref<1x!tpu.dma_semaphore, #tpu.memory_space<semaphore_mem>>
    %19 = tpu.memref_squeeze %18 : memref<1x!tpu.dma_semaphore, #tpu.memory_space<semaphore_mem>> -> memref<!tpu.dma_semaphore, #tpu.memory_space<semaphore_mem>>
    tpu.wait_dma2 semaphore(%19 : memref<!tpu.dma_semaphore, #tpu.memory_space<semaphore_mem>>) src(%16 : memref<2x1536xf32, #tpu.memory_space<any>>) dst(%17 : memref<2x1536xf32, #tpu.memory_space<any>>)
    %c2_i32_20 = arith.constant 2 : i32
    %c0_i32_21 = arith.constant 0 : i32
    %c0_i32_22 = arith.constant 0 : i32
    %20 = tpu.memref_slice %arg2[%c0_i32_21, %c0_i32_22] : memref<2x512xf32, #tpu.memory_space<any>> -> memref<2x512xf32, #tpu.memory_space<any>>
    %c0_i32_23 = arith.constant 0 : i32
    %c2560_i32_24 = arith.constant 2560 : i32
    %21 = tpu.memref_slice %arg3[%c0_i32_23, %c2560_i32_24] : memref<2x3072xf32, #tpu.memory_space<any>> -> memref<2x512xf32, #tpu.memory_space<any>>
    %22 = tpu.memref_slice %arg4[%c2_i32_20] : memref<3x!tpu.dma_semaphore, #tpu.memory_space<semaphore_mem>> -> memref<1x!tpu.dma_semaphore, #tpu.memory_space<semaphore_mem>>
    %23 = tpu.memref_squeeze %22 : memref<1x!tpu.dma_semaphore, #tpu.memory_space<semaphore_mem>> -> memref<!tpu.dma_semaphore, #tpu.memory_space<semaphore_mem>>
    tpu.wait_dma2 semaphore(%23 : memref<!tpu.dma_semaphore, #tpu.memory_space<semaphore_mem>>) src(%20 : memref<2x512xf32, #tpu.memory_space<any>>) dst(%21 : memref<2x512xf32, #tpu.memory_space<any>>)
    return
  }
}

</mosaic_0001>

<llo_original>
// kernel: tpu_custom_call.1
$region0: #{tpu_custom_call.1}
  #allocation0 [shape = 'u32[]', space=smem, size = 0x4, offset = 0x4, fixed_abs, tag = 'smem constant byte address 0x4 - core index']
  #allocation1 [shape = 'u32[144,128]{1,0:T(1,128)}', space=vmem, size = 0x12000, scoped, tag = 'internal scratch']
  #allocation2 [shape = 's32[3]{0}', space=sflag, size = 0xc, scoped, tag = 'scratch operand']
  #allocation3 [shape = 's32[]', space=sflag, size = 0x4, offset = 0, fixed_abs, tag = 'sflag constant byte address 0x0 - dummy sync flag']
  #allocation4 [shape = 'u32[0]{0}', space=smem, size = 0, offset = 0, fixed_abs, tag = 'smem constant byte address 0x0 - null']
  #allocation5 [shape = 's32[]', space=sflag, size = 0x4, offset = 0, fixed_abs, tag = 'sflag constant byte address 0x0 - dummy sync flag']
  #allocation6 [shape = 'u32[0]{0}', space=smem, size = 0, offset = 0, fixed_abs, tag = 'smem constant byte address 0x0 - null']
  #allocation7 [shape = 's32[]', space=sflag, size = 0x4, offset = 0, fixed_abs, tag = 'sflag constant byte address 0x0 - dummy sync flag']
  #allocation8 [shape = 'u32[0]{0}', space=smem, size = 0, offset = 0, fixed_abs, tag = 'smem constant byte address 0x0 - null']
  %s0 = inlined_call_operand.hbm [shape: f32[2,1024], index: 0, kind: input, shape index: {}]
  %s1 = inlined_call_operand.hbm [shape: f32[2,1536], index: 1, kind: input, shape index: {}]
  %s2 = inlined_call_operand.hbm [shape: f32[2,512], index: 2, kind: input, shape index: {}]
  %s3 = inlined_call_operand.hbm [shape: f32[2,3072], index: 3, kind: output, shape index: {}]
  %s4 = sld [smem:[#allocation0]]
  $region2: #{tpu_custom_call.1} parent=0
    _
  %s6 = ssub.s32 1, %s4
  %s7 = scalar_select 0, %s6, %s4
  %s9 = sshll.u32 1, 14
  %s10 = sxor.u32 4294967295, %s9
  %14 = dma.general %s0, 256, %s3, [#allocation2], 131072, [#allocation4], 0, 0
  %s15 = scalar_lea.hbm %s3, 256
  %s16 = scalar_lea.sflag [#allocation2], 1
  %s18 = sshll.u32 1, 14
  %s19 = sxor.u32 4294967295, %s18
  %23 = dma.general %s1, 384, %s15, %s16, 131072, [#allocation6], 0, 0
  %s24 = scalar_lea.hbm %s3, 640
  %s25 = scalar_lea.sflag [#allocation2], 2
  %s27 = sshll.u32 1, 14
  %s28 = sxor.u32 4294967295, %s27
  %32 = dma.general %s2, 128, %s24, %s25, 131072, [#allocation8], 0, 0
  %s33 = smul.u32 2, 1
  %s34 = smul.u32 %s33, 8
  %s35 = sshll.u32 %s34, 4
  %36 = dma.done [#allocation2], %s35
  %s37 = smul.u32 %s33, 12
  %s38 = sshll.u32 %s37, 4
  %39 = dma.done %s16, %s38
  %s40 = smul.u32 %s33, 4
  %s41 = sshll.u32 %s40, 4
  %42 = dma.done %s25, %s41
  %43 = vsyncmov [#allocation2]
  %s44 = vpop.sfrf %43
  %p45 = scmp.eq.s32.totalorder %s44, 0
  %p46 = pneg %p45
  %48 = shalt.err (%p46)
  %s49 = scalar_lea.sflag [#allocation2], 1
  %50 = vsyncmov %s49
  %s51 = vpop.sfrf %50
  %p52 = scmp.eq.s32.totalorder %s51, 0
  %p53 = pneg %p52
  %55 = shalt.err (%p53)
  %s56 = scalar_lea.sflag [#allocation2], 2
  %57 = vsyncmov %s56
  %s58 = vpop.sfrf %57
  %p59 = scmp.eq.s32.totalorder %s58, 0
  %p60 = pneg %p59
  %62 = shalt.err (%p60)

</llo_original>
